<compile_context>
chip_gen: v7x
topology: tpu7x:2x2x1
jax: 0.10.0
libtpu: 0.0.40
codegen_flags: <defaults>
</compile_context>

<pallas_src>
import math

import jax
import jax.numpy as jnp
from jax.experimental import pallas as pl
from jax.experimental.pallas import tpu as pltpu


def _round_up(x, m):
    return ((x + m - 1) // m) * m


# ---------------------------------------------------------------------------
# One-shot weight-normalization kernel (runs once per forward).
# Operates on Wt = W.T with shape [N, M]; row norms of W are column norms of
# Wt, i.e. a reduction over axis 0.
# ---------------------------------------------------------------------------
def _make_norm_kernel(mode):
    if mode == 'rows_scaled':
        def kernel(wt_ref, s_ref, o_ref):
            wt = wt_ref[...].astype(jnp.float32)
            s = jnp.clip(s_ref[...].astype(jnp.float32), 0.0, 1.0)        # [1, M]
            scale = jax.lax.rsqrt(jnp.sum(wt * wt, axis=0, keepdims=True)) * s
            o_ref[...] = (wt * scale).astype(o_ref.dtype)
        return kernel

    def kernel(wt_ref, o_ref):
        wt = wt_ref[...].astype(jnp.float32)
        if mode == 'frobenius':
            scale = jax.lax.rsqrt(jnp.sum(wt * wt))
        else:  # 'rows'
            scale = jax.lax.rsqrt(jnp.sum(wt * wt, axis=0, keepdims=True))
        o_ref[...] = (wt * scale).astype(o_ref.dtype)
    return kernel


def _normalize_weight_t(weight, row_scaling, mode, compute_dtype):
    """Returns normalize(W).T as a [N, M] array in `compute_dtype`."""
    M, N = weight.shape
    wt_raw = weight.T  # one-time layout plumbing (lane-dense output dim M)

    if mode is False:
        return wt_raw.astype(compute_dtype)
    if mode not in ('frobenius', 'rows', 'rows_scaled'):
        raise ValueError('Invalid weight normalization mode')

    full = pl.BlockSpec((N, M), lambda i: (0, 0))
    operands = [wt_raw]
    in_specs = [full]
    if mode == 'rows_scaled':
        if row_scaling is None:
            row_scaling = jnp.ones((M, 1), weight.dtype)
        operands.append(row_scaling.reshape(1, M))
        in_specs.append(pl.BlockSpec((1, M), lambda i: (0, 0)))

    return pl.pallas_call(
        _make_norm_kernel(mode),
        out_shape=jax.ShapeDtypeStruct((N, M), compute_dtype),
        grid=(1,),
        in_specs=in_specs,
        out_specs=full,
    )(*operands)


# ---------------------------------------------------------------------------
# Batch-tiled matmul kernel: y[b, m] = sum_n x[b, n] * Wt[n, m]
# Wt stays VMEM-resident across all batch tiles (constant block index).
# ---------------------------------------------------------------------------
def _matmul_kernel(x_ref, wt_ref, o_ref):
    x = x_ref[...].astype(wt_ref.dtype)
    y = jax.lax.dot_general(
        x, wt_ref[...],
        dimension_numbers=(((1,), (0,)), ((), ())),
        preferred_element_type=jnp.float32,
    )
    o_ref[...] = y.astype(o_ref.dtype)


def linear_normalized(x, weight, row_scaling=None, mode=False,
                      tile_b=256, compute_dtype=None):
    """Pallas TPU implementation of LinearNormalized.forward (no bias).

    x:             [B, N_in]
    weight:        [M_out, N_in]  (torch `_weight` convention)
    row_scaling:   [M_out, 1]     (only read when mode == 'rows_scaled')
    compute_dtype: dtype fed to the MXU (defaults to x.dtype; pass
                   jnp.bfloat16 for peak MXU throughput on v6e/v7x).
    """
    B, N = x.shape
    M, Nw = weight.shape
    assert N == Nw, "input feature dim must match weight's second dim"
    if compute_dtype is None:
        compute_dtype = x.dtype
    out_dtype = x.dtype

    # 1) One-shot (O(M*N)) weight normalization, hoisted out of the batch loop.
    wt = _normalize_weight_t(weight, row_scaling, mode, compute_dtype)  # [N, M]

    # 2) Batch tile: large (default 256), multiple of 8; pad B if needed.
    tile_b = _round_up(max(8, min(tile_b, _round_up(B, 8))), 8)
    Bp = _round_up(B, tile_b)
    x_in = jnp.pad(x, ((0, Bp - B), (0, 0))) if Bp != B else x

    grid = (Bp // tile_b,)
    out = pl.pallas_call(
        _matmul_kernel,
        out_shape=jax.ShapeDtypeStruct((Bp, M), out_dtype),
        grid=grid,
        in_specs=[
            pl.BlockSpec((tile_b, N), lambda i: (i, 0)),   # x: tiled over batch
            pl.BlockSpec((N, M), lambda i: (0, 0)),        # Wt: VMEM-resident
        ],
        out_specs=pl.BlockSpec((tile_b, M), lambda i: (i, 0)),
        compiler_params=pltpu.CompilerParams(
            dimension_semantics=("parallel",),
        ),
    )(x_in, wt)
    # TODO(synk): for very large M*N on v7x (64 MiB VMEM/TC), add M/K grid axes
    # with a VMEM f32 accumulator instead of keeping the full Wt resident.
    return out[:B] if Bp != B else out


# ---------------------------------------------------------------------------
# Pure-JAX reference (mirrors the PyTorch module)
# ---------------------------------------------------------------------------
def _reference(x, weight, row_scaling, mode):
    w = weight.astype(jnp.float32)
    if mode == 'frobenius':
        w = w / jnp.linalg.norm(w)
    elif mode == 'rows':
        w = w / jnp.linalg.norm(w, axis=1, keepdims=True)
    elif mode == 'rows_scaled':
        s = jnp.clip(row_scaling.astype(jnp.float32), 0.0, 1.0)
        w = w / jnp.linalg.norm(w, axis=1, keepdims=True) * s
    return x.astype(jnp.float32) @ w.T


if __name__ == "__main__":
    key = jax.random.PRNGKey(0)
    k_x, k_w, k_s, k_x2 = jax.random.split(key, 4)

    batch = 16
    input_size = 32
    output_size = 16

    # kaiming_uniform_(a=sqrt(5)) => bound = 1/sqrt(fan_in)
    bound = 1.0 / math.sqrt(input_size)
    weight = jax.random.uniform(k_w, (output_size, input_size), jnp.float32,
                                minval=-bound, maxval=bound)
    # values > 1 exercise the clamp in 'rows_scaled'
    row_scaling = jax.random.uniform(k_s, (output_size, 1), jnp.float32,
                                     minval=0.2, maxval=1.3)
    x = jax.random.normal(k_x, (batch, input_size), jnp.float32)

    ok = True

    # f32 compute path, all normalization modes.
    for mode in (False, 'frobenius', 'rows', 'rows_scaled'):
        out = jax.block_until_ready(
            linear_normalized(x, weight, row_scaling, mode=mode))
        ref = _reference(x, weight, row_scaling, mode)
        if not jnp.allclose(out, ref, atol=1e-5, rtol=1e-5):
            ok = False
            print(f"mismatch for mode={mode} (f32)")

    # Multi-step grid + batch-padding path (B=20 not divisible by tile_b=8*2).
    x_big = jax.random.normal(k_x2, (20, input_size), jnp.float32)
    out = jax.block_until_ready(
        linear_normalized(x_big, weight, row_scaling, mode='rows', tile_b=8))
    ref = _reference(x_big, weight, row_scaling, 'rows')
    if not jnp.allclose(out, ref, atol=1e-5, rtol=1e-5):
        ok = False
        print("mismatch for padded multi-tile case")

    # bf16 MXU path (f32 accumulate), loose tolerance.
    out = jax.block_until_ready(
        linear_normalized(x, weight, row_scaling, mode='rows',
                          compute_dtype=jnp.bfloat16))
    ref = _reference(x, weight, row_scaling, 'rows')
    if not jnp.allclose(out.astype(jnp.float32), ref, atol=5e-2, rtol=5e-2):
        ok = False
        print("mismatch for bf16 compute path")

    if ok:
        print("KERNEL_OK")
</pallas_src>

<mosaic_0001>
module attributes {stable_mosaic.version = 11 : i64} {
  func.func @_matmul_kernel(%arg0: i32, %arg1: memref<16x32xf32, #tpu.memory_space<vmem>>, %arg2: memref<32x16xf32, #tpu.memory_space<vmem>>, %arg3: memref<16x16xf32, #tpu.memory_space<vmem>>) attributes {dimension_semantics = [#tpu.dimension_semantics<parallel>], iteration_bounds = array<i64: 1>, scalar_prefetch = 0 : i64, scratch_operands = 0 : i64, tpu.core_type = #tpu.core_type<tc>, window_params = [{transform_indices = @transform_0, window_bounds = array<i64: 16, 32>}, {pipeline_mode = #tpu.pipeline_mode<synchronous>, transform_indices = @transform_1, window_bounds = array<i64: 32, 16>}, {transform_indices = @transform_2, window_bounds = array<i64: 16, 16>}]} {
    %c0 = arith.constant 0 : index
    %c0_0 = arith.constant 0 : index
    %0 = vector.load %arg1[%c0, %c0_0] : memref<16x32xf32, #tpu.memory_space<vmem>>, vector<16x32xf32>
    %c0_1 = arith.constant 0 : index
    %c0_2 = arith.constant 0 : index
    %1 = vector.load %arg2[%c0_1, %c0_2] : memref<32x16xf32, #tpu.memory_space<vmem>>, vector<32x16xf32>
    %cst = arith.constant dense<0.000000e+00> : vector<16x16xf32>
    %2 = tpu.matmul %0, %1, %cst {dimension_numbers = #tpu.dot_dimension_numbers<[1], [0], [0], [1], [0, 0, 1, 1], [], []>} : vector<16x32xf32>, vector<32x16xf32>, vector<16x16xf32> -> vector<16x16xf32>
    %c0_3 = arith.constant 0 : index
    %c0_4 = arith.constant 0 : index
    %3 = vector.load %arg3[%c0_3, %c0_4] : memref<16x16xf32, #tpu.memory_space<vmem>>, vector<16x16xf32>
    tpu.vector_store %arg3[%c0_3, %c0_4], %2 {strides = array<i32>} : memref<16x16xf32, #tpu.memory_space<vmem>>, vector<16x16xf32>,
    return
  }
  func.func @transform_0(%arg0: i32) -> (i32, i32) {
    %c0_i32 = arith.constant 0 : i32
    %c0_i32_0 = arith.constant 0 : i32
    return %arg0, %c0_i32 : i32, i32
  }
  func.func @transform_1(%arg0: i32) -> (i32, i32) {
    %c0_i32 = arith.constant 0 : i32
    %c0_i32_0 = arith.constant 0 : i32
    %c0_i32_1 = arith.constant 0 : i32
    return %c0_i32, %c0_i32_0 : i32, i32
  }
  func.func @transform_2(%arg0: i32) -> (i32, i32) {
    %c0_i32 = arith.constant 0 : i32
    %c0_i32_0 = arith.constant 0 : i32
    return %arg0, %c0_i32 : i32, i32
  }
}

</mosaic_0001>

<llo_original>
// kernel: tpu_custom_call.1
$region0: #{tpu_custom_call.1}
  #allocation0 [shape = 'u32[]', space=smem, size = 0x4, offset = 0x4, fixed_abs, tag = 'smem constant byte address 0x4 - core index']
  #allocation1 [shape = 'u32[144,128]{1,0:T(1,128)}', space=vmem, size = 0x12000, scoped, tag = 'internal scratch']
  %s0 = inlined_call_operand.vmem [shape: f32[16,32], index: 0, kind: input, shape index: {}]
  %s1 = inlined_call_operand.vmem [shape: f32[32,16], index: 1, kind: input, shape index: {}]
  %s2 = inlined_call_operand.hbm [shape: f32[16,16], index: 2, kind: output, shape index: {}]
  %s3 = sld [smem:[#allocation0]]
  $region18: #{tpu_custom_call.1} parent=0
    _
  %s5 = ssub.s32 1, %s3
  %s6 = scalar_select 0, %s5, %s3
  $region1: #{tpu_custom_call.1} parent=0
    #allocation2 [shape = 'u8[8192]{0}', space=vmem, size = 0x2000, scoped, tag = 'output window, operand 0, single buffered']
    #allocation3 [shape = 's32[1]{0}', space=sflag, size = 0x4, scoped, tag = 'scoped memory for tpu_custom_call.1']
    %7 = vsyncpa [#allocation3], 0
    // Predicated region
    $region2: #{tpu_custom_call.1} parent=1 // pred_check
      _
    $region3: #{tpu_custom_call.1} parent=1 // pred_check_branch
      %9 = sbr.rel (0) target = $region5
    $region4: #{tpu_custom_call.1} parent=1 // pred_region
      _
    $region5: #{tpu_custom_call.1} parent=1 // pred_fallthru
      _
    // Predicated region
    $region6: #{tpu_custom_call.1} parent=1 // pred_check
      _
    $region7: #{tpu_custom_call.1} parent=1 // pred_check_branch
      %11 = sbr.rel (0) target = $region9
    $region8: #{tpu_custom_call.1} parent=1 // pred_region
      _
    $region9: #{tpu_custom_call.1} parent=1 // pred_fallthru
      _
    %v12 = vld [vmem:[%s0] sm:$0xff]
    %v13 = vld [vmem:[%s0 + $0x8] sm:$0xff]
    %v14 = vld [vmem:[%s1] sm:$0xff]
    %v15 = vld [vmem:[%s1 + $0x8] sm:$0xff]
    %v16 = vld [vmem:[%s1 + $0x10] sm:$0xff]
    %v17 = vld [vmem:[%s1 + $0x18] sm:$0xff]
    %vm18 = vcmask 261120
    %v20 = vsel %vm18, %v12, 0
    %v23 = vsel %vm18, %v13, 0
    %25 = vmatprep.subr.mxu0 0.0
    %26 = vmatpush1.msra.mxu0 %v14
    %27 = vmatprep.subr.mxu0 0.0
    %28 = vmatpush1.msra.mxu0 %v15
    %29 = vmatprep.subr.mxu0 0.0
    %30 = vmatpush1.msra.mxu0 %v16
    %31 = vmatprep.subr.mxu0 0.0
    %32 = vmatpush1.msra.mxu0 %v17
    %33 = vmatprep.subr.mxu0 0.0
    %34 = vmatpush1.msra.mxu0 0.0
    %35 = vmatprep.subr.mxu0 0.0
    %36 = vmatpush1.msra.mxu0 0.0
    %37 = vmatprep.subr.mxu0 0.0
    %38 = vmatpush1.msra.mxu0 0.0
    %39 = vmatprep.subr.mxu0 0.0
    %40 = vmatpush1.msra.mxu0 0.0
    %41 = vmatprep.subr.mxu0 0.0
    %42 = vmatpush1.msra.mxu0 0.0
    %43 = vmatprep.subr.mxu0 0.0
    %44 = vmatpush1.msra.mxu0 0.0
    %45 = vmatprep.subr.mxu0 0.0
    %46 = vmatpush1.msra.mxu0 0.0
    %47 = vmatprep.subr.mxu0 0.0
    %48 = vmatpush1.msra.mxu0 0.0
    %49 = vmatprep.subr.mxu0 0.0
    %50 = vmatpush1.msra.mxu0 0.0
    %51 = vmatprep.subr.mxu0 0.0
    %52 = vmatpush1.msra.mxu0 0.0
    %53 = vmatprep.subr.mxu0 0.0
    %54 = vmatpush1.msra.mxu0 0.0
    %55 = vmatprep.subr.mxu0 0.0
    %56 = vmatpush1.msra.mxu0 0.0
    %57 = vmatprep.subr.mxu0 0.0
    %58 = vmatpush1.msra.mxu0 0.0
    %59 = vmatprep.subr.mxu0 0.0
    %60 = vmatpush1.msra.mxu0 0.0
    %61 = vmatprep.subr.mxu0 0.0
    %62 = vmatpush1.msra.mxu0 0.0
    %63 = vmatprep.subr.mxu0 0.0
    %64 = vmatpush1.msra.mxu0 0.0
    %65 = vmatprep.subr.mxu0 0.0
    %66 = vmatpush1.msra.mxu0 0.0
    %67 = vmatprep.subr.mxu0 0.0
    %68 = vmatpush1.msra.mxu0 0.0
    %69 = vmatprep.subr.mxu0 0.0
    %70 = vmatpush1.msra.mxu0 0.0
    %71 = vmatprep.subr.mxu0 0.0
    %72 = vmatpush1.msra.mxu0 0.0
    %73 = vmatprep.subr.mxu0 0.0
    %74 = vmatpush1.msra.mxu0 0.0
    %75 = vmatprep.subr.mxu0 0.0
    %76 = vmatpush1.msra.mxu0 0.0
    %77 = vmatprep.subr.mxu0 0.0
    %78 = vmatpush1.msra.mxu0 0.0
    %79 = vmatprep.subr.mxu0 0.0
    %80 = vmatpush1.msra.mxu0 0.0
    %81 = vmatprep.subr.mxu0 0.0
    %82 = vmatpush1.msra.mxu0 0.0
    %83 = vmatprep.subr.mxu0 0.0
    %84 = vmatpush1.msra.mxu0 0.0
    %85 = vmatprep.subr.mxu0 0.0
    %86 = vmatpush1.msra.mxu0 0.0
    %87 = vmatprep.subr.mxu0 0.0
    %88 = vmatpush1.msra.mxu0 0.0
    %89 = vmatprep.mubr.f32.mxu0 0.0
    %90 = vmatmul.mubr.f32.gmra.mrb[0].mxu0 %v20
    %v91 = vpop.f32.mrb[0].mxu0
    %v92 = vadd.f32 0.0, %v91
    %v93 = vpop.f32.mrb[0].mxu0
    %94 = vmatprep.mubr.f32.mxu0 0.0
    %95 = vmatmul.mubr.f32.gmra.mrb[0].mxu0 %v23
    %v96 = vpop.f32.mrb[0].mxu0
    %v97 = vadd.f32 0.0, %v96
    %v98 = vpop.f32.mrb[0].mxu0
    %99 = vdwg.mxu0
    %vm100 = vcmask 130048
    %101 = vst.msk [vmem:[#allocation2] sm:$0xff] %vm100, %v92
    %102 = vst.msk [vmem:[#allocation2 + $0x8] sm:$0xff] %vm100, %v97
    // Predicated region
    $region10: #{tpu_custom_call.1} parent=1 // pred_check
      _
    $region11: #{tpu_custom_call.1} parent=1 // pred_check_branch
      %104 = sbr.rel (0) target = $region13
    $region12: #{tpu_custom_call.1} parent=1 // pred_region
      %s106 = ssub.s32 256, 256
      %107 = vsyncadd [#allocation3], %s106
      %s108 = sshll.u32 [#allocation2], 4
      %s109 = int_to_ptr.vmem [resolvable:$true] %s108
      %114 = dma.vmem_to_hbm [thread:$0]  %s109, 256, %s2, [#allocation3], 128, 128, 8
    $region13: #{tpu_custom_call.1} parent=1 // pred_fallthru
      _
    // Predicated region
    $region14: #{tpu_custom_call.1} parent=1 // pred_check
      _
    $region15: #{tpu_custom_call.1} parent=1 // pred_check_branch
      %116 = sbr.rel (0) target = $region17
    $region16: #{tpu_custom_call.1} parent=1 // pred_region
      %117 = dma.done [#allocation3], 256
    $region17: #{tpu_custom_call.1} parent=1 // pred_fallthru
      _
    %118 = vsyncpa [#allocation3], 1

</llo_original>
